<compile_context>
chip_gen: v5e
topology: v5e:2x2
jax: 0.10.0
libtpu: 0.0.40
codegen_flags: <defaults>
</compile_context>

<pallas_src>
import functools

import jax
import jax.numpy as jnp
from jax import lax
from jax.experimental import pallas as pl
from jax.experimental.pallas import tpu as pltpu


def _cbow_kernel(idx_ref, w_ref, out_ref, hidden_ref, m_ref, l_ref, *,
                 context, tile_n):
    # idx_ref:    (tb, C)      int32  VMEM  context ticker indices (per batch tile)
    # w_ref:      (tile_n, D)  f32    VMEM  one weight tile (streamed over N)
    # out_ref:    (tb, tile_n) f32    VMEM  log-probability tile
    # hidden_ref: (tb, D)      f32    VMEM  scratch: mean context embedding
    # m_ref:      (tb, 1)      f32    VMEM  scratch: running max, then lse
    # l_ref:      (tb, 1)      f32    VMEM  scratch: running sum of exp
    phase = pl.program_id(1)          # 0: hidden, 1: logsumexp stats, 2: write
    i = pl.program_id(2)              # N-tile index
    nt = pl.num_programs(2)
    tb = hidden_ref.shape[0]
    inv_c = 1.0 / float(context)

    @pl.when(jnp.logical_and(phase == 0, i == 0))
    def _init():
        hidden_ref[...] = jnp.zeros_like(hidden_ref)
        m_ref[...] = jnp.full_like(m_ref, -jnp.inf)
        l_ref[...] = jnp.zeros_like(l_ref)

    @pl.when(phase == 0)
    def _accumulate_hidden():
        # counts[b, j] = #times ticker (i*tile_n + j) appears in context of b.
        cols = lax.broadcasted_iota(jnp.int32, (tb, tile_n), 1) + i * tile_n
        counts = jnp.zeros((tb, tile_n), jnp.float32)
        for c in range(context):                       # C is small & static
            counts = counts + (idx_ref[:, c:c + 1] == cols).astype(jnp.float32)
        # Fused gather+sum as a single MXU matmul (duplicates accumulate).
        hidden_ref[...] += lax.dot_general(
            counts.astype(w_ref.dtype), w_ref[...],
            dimension_numbers=(((1,), (0,)), ((), ())),
            preferred_element_type=jnp.float32)

        @pl.when(i == nt - 1)
        def _fold_mean():
            hidden_ref[...] *= inv_c                   # context mean = sum * 1/C

    @pl.when(phase == 1)
    def _logsumexp_stats():
        # scores[b, n] = <hidden[b, :], W[n, :]>  (contract D vs D, no transpose)
        scores = lax.dot_general(
            hidden_ref[...].astype(w_ref.dtype), w_ref[...],
            dimension_numbers=(((1,), (1,)), ((), ())),
            preferred_element_type=jnp.float32)        # (tb, tile_n)
        m_prev = m_ref[...]
        m_new = jnp.maximum(m_prev, jnp.max(scores, axis=-1, keepdims=True))
        l_ref[...] = (l_ref[...] * jnp.exp(m_prev - m_new)
                      + jnp.sum(jnp.exp(scores - m_new), axis=-1, keepdims=True))
        m_ref[...] = m_new

        @pl.when(i == nt - 1)
        def _finalize_lse():
            m_ref[...] = m_ref[...] + jnp.log(l_ref[...])   # m_ref now holds lse

    @pl.when(phase == 2)
    def _write_output():
        scores = lax.dot_general(
            hidden_ref[...].astype(w_ref.dtype), w_ref[...],
            dimension_numbers=(((1,), (1,)), ((), ())),
            preferred_element_type=jnp.float32)
        # log_softmax tile, written with a single lane-dense full-block store.
        out_ref[...] = scores - m_ref[...]


def cbow_stock_modeller_forward(inputs, emb_weight):
    """inputs: [B, C] int ticker indices, emb_weight: [N, D] -> [B, N, 1] f32."""
    B, C = inputs.shape
    N, D = emb_weight.shape

    # Batch tile: one sublane-aligned block when possible, full batch otherwise.
    tb = 128 if (B > 128 and B % 128 == 0) else B
    nb = B // tb

    # N tile: lane-dense multiple of 128 (full N if it is not 128-aligned).
    if N % 128 == 0:
        tile_n = 512 if (N % 512 == 0 and N >= 2048) else 128
    else:
        tile_n = N
    nt = N // tile_n

    kernel = functools.partial(_cbow_kernel, context=C, tile_n=tile_n)
    w_bytes = emb_weight.dtype.itemsize

    out = pl.pallas_call(
        kernel,
        out_shape=jax.ShapeDtypeStruct((B, N), jnp.float32),
        grid_spec=pltpu.PrefetchScalarGridSpec(
            num_scalar_prefetch=0,
            grid=(nb, 3, nt),                           # (batch tiles, phase, N tiles)
            in_specs=[
                pl.BlockSpec((tb, C), lambda b, p, i: (b, 0)),      # indices
                pl.BlockSpec((tile_n, D), lambda b, p, i: (i, 0)),  # weight stream
            ],
            # Park the output block during phases 0/1 (no garbage writebacks),
            # then walk the N tiles during the write phase.
            out_specs=pl.BlockSpec(
                (tb, tile_n), lambda b, p, i: (b, jnp.where(p == 2, i, 0))),
            scratch_shapes=[
                pltpu.VMEM((tb, D), jnp.float32),   # hidden accumulator
                pltpu.VMEM((tb, 1), jnp.float32),   # running max -> lse
                pltpu.VMEM((tb, 1), jnp.float32),   # running sum of exp
            ],
        ),
        compiler_params=pltpu.CompilerParams(
            dimension_semantics=("parallel", "arbitrary", "arbitrary")),
        cost_estimate=pl.CostEstimate(
            flops=6 * B * N * D + B * C * N,            # 3 matmul passes + counts
            transcendentals=B * N + B,                  # exp + log
            bytes_accessed=3 * nb * N * D * w_bytes + B * N * 4 + B * C * 4),
    )(inputs.astype(jnp.int32), emb_weight)

    # Match torch output shape [B, N, 1] (log_softmax was over dim=1 == N).
    return out[:, :, None]


def _reference(inputs, emb_weight):
    temp = jnp.take(emb_weight, inputs, axis=0)           # (B, C, D)
    hidden = temp.mean(axis=1)[:, :, None]                # (B, D, 1)
    out = jnp.einsum("nd,bdo->bno", emb_weight, hidden)   # (B, N, 1)
    return jax.nn.log_softmax(out, axis=1)


if __name__ == "__main__":
    n_tickers = 256       # N
    embedding_dim = 32    # D
    batch = 8             # B (>= 8 so softmax rows / stores are sublane-full)
    context = 8           # C

    key = jax.random.PRNGKey(0)
    k_w, k_idx = jax.random.split(key)

    # Deterministic synthetic "nn.Embedding" weight (not a checkpoint).
    emb_weight = jax.random.normal(k_w, (n_tickers, embedding_dim), jnp.float32)
    inputs = jax.random.randint(k_idx, (batch, context), 0, n_tickers, jnp.int32)

    out = cbow_stock_modeller_forward(inputs, emb_weight)
    out = jax.block_until_ready(out)

    ref = _reference(inputs, emb_weight)
    assert out.shape == (batch, n_tickers, 1)
    assert jnp.allclose(out, ref, atol=1e-4, rtol=1e-4)

    print("KERNEL_OK")
</pallas_src>

<mosaic_0001>
module attributes {stable_mosaic.version = 11 : i64} {
  func.func @_cbow_kernel(%arg0: i32, %arg1: i32, %arg2: i32, %arg3: memref<8x8xi32, #tpu.memory_space<vmem>>, %arg4: memref<128x32xf32, #tpu.memory_space<vmem>>, %arg5: memref<8x128xf32, #tpu.memory_space<vmem>>, %arg6: memref<8x32xf32, #tpu.memory_space<vmem>>, %arg7: memref<8x1xf32, #tpu.memory_space<vmem>>, %arg8: memref<8x1xf32, #tpu.memory_space<vmem>>) attributes {dimension_semantics = [#tpu.dimension_semantics<parallel>, #tpu.dimension_semantics<arbitrary>, #tpu.dimension_semantics<arbitrary>], iteration_bounds = array<i64: 1, 3, 2>, scalar_prefetch = 0 : i64, scratch_operands = 3 : i64, tpu.core_type = #tpu.core_type<tc>, window_params = [{transform_indices = @transform_0, window_bounds = array<i64: 8, 8>}, {transform_indices = @transform_1, window_bounds = array<i64: 128, 32>}, {transform_indices = @transform_2, window_bounds = array<i64: 8, 128>}]} {
    %c0_i32 = arith.constant 0 : i32
    %0 = arith.cmpi eq, %arg1, %c0_i32 : i32
    %c0_i32_0 = arith.constant 0 : i32
    %1 = arith.cmpi eq, %arg2, %c0_i32_0 : i32
    %2 = arith.andi %0, %1 : i1
    %3 = arith.extui %2 : i1 to i32
    %c0_i32_1 = arith.constant 0 : i32
    %4 = arith.cmpi ne, %3, %c0_i32_1 : i32
    scf.if %4 {
      %cst = arith.constant 0.000000e+00 : f32
      %14 = vector.broadcast %cst : f32 to vector<8x32xf32>
      %c0 = arith.constant 0 : index
      %c0_6 = arith.constant 0 : index
      %15 = vector.load %arg6[%c0, %c0_6] : memref<8x32xf32, #tpu.memory_space<vmem>>, vector<8x32xf32>
      tpu.vector_store %arg6[%c0, %c0_6], %14 {strides = array<i32>} : memref<8x32xf32, #tpu.memory_space<vmem>>, vector<8x32xf32>,
      %cst_7 = arith.constant 0xFF800000 : f32
      %16 = vector.broadcast %cst_7 : f32 to vector<8x1xf32>
      %c0_8 = arith.constant 0 : index
      %c0_9 = arith.constant 0 : index
      %17 = vector.load %arg7[%c0_8, %c0_9] : memref<8x1xf32, #tpu.memory_space<vmem>>, vector<8x1xf32>
      tpu.vector_store %arg7[%c0_8, %c0_9], %16 {strides = array<i32>} : memref<8x1xf32, #tpu.memory_space<vmem>>, vector<8x1xf32>,
      %cst_10 = arith.constant 0.000000e+00 : f32
      %18 = vector.broadcast %cst_10 : f32 to vector<8x1xf32>
      %c0_11 = arith.constant 0 : index
      %c0_12 = arith.constant 0 : index
      %19 = vector.load %arg8[%c0_11, %c0_12] : memref<8x1xf32, #tpu.memory_space<vmem>>, vector<8x1xf32>
      tpu.vector_store %arg8[%c0_11, %c0_12], %18 {strides = array<i32>} : memref<8x1xf32, #tpu.memory_space<vmem>>, vector<8x1xf32>,
    } else {
    }
    %c0_i32_2 = arith.constant 0 : i32
    %5 = arith.cmpi eq, %arg1, %c0_i32_2 : i32
    %6 = arith.extui %5 : i1 to i32
    %c0_i32_3 = arith.constant 0 : i32
    %7 = arith.cmpi ne, %6, %c0_i32_3 : i32
    scf.if %7 {
      %14 = tpu.iota {dimensions = array<i32: 1>} : vector<8x128xi32>
      %c128_i32 = arith.constant 128 : i32
      %15 = arith.muli %arg2, %c128_i32 : i32
      %16 = vector.broadcast %15 : i32 to vector<8x128xi32>
      %17 = arith.addi %14, %16 : vector<8x128xi32>
      %cst = arith.constant 0.000000e+00 : f32
      %18 = vector.broadcast %cst : f32 to vector<8x128xf32>
      %c0 = arith.constant 0 : index
      %c0_6 = arith.constant 0 : index
      %19 = vector.load %arg3[%c0, %c0_6] : memref<8x8xi32, #tpu.memory_space<vmem>>, vector<8x1xi32>
      %20 = vector.broadcast %19 : vector<8x1xi32> to vector<8x128xi32>
      %21 = arith.cmpi eq, %20, %17 : vector<8x128xi32>
      %22 = arith.extui %21 : vector<8x128xi1> to vector<8x128xi32>
      %23 = arith.sitofp %22 : vector<8x128xi32> to vector<8x128xf32>
      %24 = arith.addf %18, %23 : vector<8x128xf32>
      %c0_7 = arith.constant 0 : index
      %c1 = arith.constant 1 : index
      %25 = vector.load %arg3[%c0_7, %c1] : memref<8x8xi32, #tpu.memory_space<vmem>>, vector<8x1xi32>
      %26 = vector.broadcast %25 : vector<8x1xi32> to vector<8x128xi32>
      %27 = arith.cmpi eq, %26, %17 : vector<8x128xi32>
      %28 = arith.extui %27 : vector<8x128xi1> to vector<8x128xi32>
      %29 = arith.sitofp %28 : vector<8x128xi32> to vector<8x128xf32>
      %30 = arith.addf %24, %29 : vector<8x128xf32>
      %c0_8 = arith.constant 0 : index
      %c2 = arith.constant 2 : index
      %31 = vector.load %arg3[%c0_8, %c2] : memref<8x8xi32, #tpu.memory_space<vmem>>, vector<8x1xi32>
      %32 = vector.broadcast %31 : vector<8x1xi32> to vector<8x128xi32>
      %33 = arith.cmpi eq, %32, %17 : vector<8x128xi32>
      %34 = arith.extui %33 : vector<8x128xi1> to vector<8x128xi32>
      %35 = arith.sitofp %34 : vector<8x128xi32> to vector<8x128xf32>
      %36 = arith.addf %30, %35 : vector<8x128xf32>
      %c0_9 = arith.constant 0 : index
      %c3 = arith.constant 3 : index
      %37 = vector.load %arg3[%c0_9, %c3] : memref<8x8xi32, #tpu.memory_space<vmem>>, vector<8x1xi32>
      %38 = vector.broadcast %37 : vector<8x1xi32> to vector<8x128xi32>
      %39 = arith.cmpi eq, %38, %17 : vector<8x128xi32>
      %40 = arith.extui %39 : vector<8x128xi1> to vector<8x128xi32>
      %41 = arith.sitofp %40 : vector<8x128xi32> to vector<8x128xf32>
      %42 = arith.addf %36, %41 : vector<8x128xf32>
      %c0_10 = arith.constant 0 : index
      %c4 = arith.constant 4 : index
      %43 = vector.load %arg3[%c0_10, %c4] : memref<8x8xi32, #tpu.memory_space<vmem>>, vector<8x1xi32>
      %44 = vector.broadcast %43 : vector<8x1xi32> to vector<8x128xi32>
      %45 = arith.cmpi eq, %44, %17 : vector<8x128xi32>
      %46 = arith.extui %45 : vector<8x128xi1> to vector<8x128xi32>
      %47 = arith.sitofp %46 : vector<8x128xi32> to vector<8x128xf32>
      %48 = arith.addf %42, %47 : vector<8x128xf32>
      %c0_11 = arith.constant 0 : index
      %c5 = arith.constant 5 : index
      %49 = vector.load %arg3[%c0_11, %c5] : memref<8x8xi32, #tpu.memory_space<vmem>>, vector<8x1xi32>
      %50 = vector.broadcast %49 : vector<8x1xi32> to vector<8x128xi32>
      %51 = arith.cmpi eq, %50, %17 : vector<8x128xi32>
      %52 = arith.extui %51 : vector<8x128xi1> to vector<8x128xi32>
      %53 = arith.sitofp %52 : vector<8x128xi32> to vector<8x128xf32>
      %54 = arith.addf %48, %53 : vector<8x128xf32>
      %c0_12 = arith.constant 0 : index
      %c6 = arith.constant 6 : index
      %55 = vector.load %arg3[%c0_12, %c6] : memref<8x8xi32, #tpu.memory_space<vmem>>, vector<8x1xi32>
      %56 = vector.broadcast %55 : vector<8x1xi32> to vector<8x128xi32>
      %57 = arith.cmpi eq, %56, %17 : vector<8x128xi32>
      %58 = arith.extui %57 : vector<8x128xi1> to vector<8x128xi32>
      %59 = arith.sitofp %58 : vector<8x128xi32> to vector<8x128xf32>
      %60 = arith.addf %54, %59 : vector<8x128xf32>
      %c0_13 = arith.constant 0 : index
      %c7 = arith.constant 7 : index
      %61 = vector.load %arg3[%c0_13, %c7] : memref<8x8xi32, #tpu.memory_space<vmem>>, vector<8x1xi32>
      %62 = vector.broadcast %61 : vector<8x1xi32> to vector<8x128xi32>
      %63 = arith.cmpi eq, %62, %17 : vector<8x128xi32>
      %64 = arith.extui %63 : vector<8x128xi1> to vector<8x128xi32>
      %65 = arith.sitofp %64 : vector<8x128xi32> to vector<8x128xf32>
      %66 = arith.addf %60, %65 : vector<8x128xf32>
      %c0_14 = arith.constant 0 : index
      %c0_15 = arith.constant 0 : index
      %67 = vector.load %arg6[%c0_14, %c0_15] : memref<8x32xf32, #tpu.memory_space<vmem>>, vector<8x32xf32>
      %c0_16 = arith.constant 0 : index
      %c0_17 = arith.constant 0 : index
      %68 = vector.load %arg4[%c0_16, %c0_17] : memref<128x32xf32, #tpu.memory_space<vmem>>, vector<128x32xf32>
      %cst_18 = arith.constant dense<0.000000e+00> : vector<8x32xf32>
      %69 = tpu.matmul %66, %68, %cst_18 {dimension_numbers = #tpu.dot_dimension_numbers<[1], [0], [0], [1], [0, 0, 1, 1], [], []>} : vector<8x128xf32>, vector<128x32xf32>, vector<8x32xf32> -> vector<8x32xf32>
      %70 = arith.addf %67, %69 : vector<8x32xf32>
      %c0_19 = arith.constant 0 : index
      %c0_20 = arith.constant 0 : index
      %71 = vector.load %arg6[%c0_19, %c0_20] : memref<8x32xf32, #tpu.memory_space<vmem>>, vector<8x32xf32>
      tpu.vector_store %arg6[%c0_19, %c0_20], %70 {strides = array<i32>} : memref<8x32xf32, #tpu.memory_space<vmem>>, vector<8x32xf32>,
      %c1_i32_21 = arith.constant 1 : i32
      %72 = arith.cmpi eq, %arg2, %c1_i32_21 : i32
      %73 = arith.extui %72 : i1 to i32
      %c0_i32_22 = arith.constant 0 : i32
      %74 = arith.cmpi ne, %73, %c0_i32_22 : i32
      scf.if %74 {
        %c0_23 = arith.constant 0 : index
        %c0_24 = arith.constant 0 : index
        %75 = vector.load %arg6[%c0_23, %c0_24] : memref<8x32xf32, #tpu.memory_space<vmem>>, vector<8x32xf32>
        %cst_25 = arith.constant 1.250000e-01 : f32
        %76 = vector.broadcast %cst_25 : f32 to vector<8x32xf32>
        %77 = arith.mulf %75, %76 : vector<8x32xf32>
        %c0_26 = arith.constant 0 : index
        %c0_27 = arith.constant 0 : index
        %78 = vector.load %arg6[%c0_26, %c0_27] : memref<8x32xf32, #tpu.memory_space<vmem>>, vector<8x32xf32>
        tpu.vector_store %arg6[%c0_26, %c0_27], %77 {strides = array<i32>} : memref<8x32xf32, #tpu.memory_space<vmem>>, vector<8x32xf32>,
      } else {
      }
    } else {
    }
    %c1_i32 = arith.constant 1 : i32
    %8 = arith.cmpi eq, %arg1, %c1_i32 : i32
    %9 = arith.extui %8 : i1 to i32
    %c0_i32_4 = arith.constant 0 : i32
    %10 = arith.cmpi ne, %9, %c0_i32_4 : i32
    scf.if %10 {
      %c0 = arith.constant 0 : index
      %c0_6 = arith.constant 0 : index
      %14 = vector.load %arg6[%c0, %c0_6] : memref<8x32xf32, #tpu.memory_space<vmem>>, vector<8x32xf32>
      %c0_7 = arith.constant 0 : index
      %c0_8 = arith.constant 0 : index
      %15 = vector.load %arg4[%c0_7, %c0_8] : memref<128x32xf32, #tpu.memory_space<vmem>>, vector<128x32xf32>
      %cst = arith.constant dense<0.000000e+00> : vector<8x128xf32>
      %16 = tpu.matmul %14, %15, %cst {dimension_numbers = #tpu.dot_dimension_numbers<[1], [1], [0], [0], [0, 0, 1, 0], [], []>} : vector<8x32xf32>, vector<128x32xf32>, vector<8x128xf32> -> vector<8x128xf32>
      %c0_9 = arith.constant 0 : index
      %c0_10 = arith.constant 0 : index
      %17 = vector.load %arg7[%c0_9, %c0_10] : memref<8x1xf32, #tpu.memory_space<vmem>>, vector<8x1xf32>
      %cst_11 = arith.constant dense<0xFF800000> : vector<8xf32>
      %18 = vector.multi_reduction <maximumf>, %16, %cst_11 [1] : vector<8x128xf32> to vector<8xf32>
      %19 = vector.shape_cast %18 : vector<8xf32> to vector<8x1xf32>
      %20 = arith.maximumf %17, %19 : vector<8x1xf32>
      %c0_12 = arith.constant 0 : index
      %c0_13 = arith.constant 0 : index
      %21 = vector.load %arg8[%c0_12, %c0_13] : memref<8x1xf32, #tpu.memory_space<vmem>>, vector<8x1xf32>
      %22 = arith.subf %17, %20 : vector<8x1xf32>
      %23 = math.exp %22 : vector<8x1xf32>
      %24 = arith.mulf %21, %23 : vector<8x1xf32>
      %25 = vector.broadcast %20 : vector<8x1xf32> to vector<8x128xf32>
      %26 = arith.subf %16, %25 : vector<8x128xf32>
      %27 = math.exp %26 : vector<8x128xf32>
      %cst_14 = arith.constant dense<0.000000e+00> : vector<8xf32>
      %28 = vector.multi_reduction <add>, %27, %cst_14 [1] : vector<8x128xf32> to vector<8xf32>
      %29 = vector.shape_cast %28 : vector<8xf32> to vector<8x1xf32>
      %30 = arith.addf %24, %29 : vector<8x1xf32>
      %c0_15 = arith.constant 0 : index
      %c0_16 = arith.constant 0 : index
      %31 = vector.load %arg8[%c0_15, %c0_16] : memref<8x1xf32, #tpu.memory_space<vmem>>, vector<8x1xf32>
      tpu.vector_store %arg8[%c0_15, %c0_16], %30 {strides = array<i32>} : memref<8x1xf32, #tpu.memory_space<vmem>>, vector<8x1xf32>,
      %c0_17 = arith.constant 0 : index
      %c0_18 = arith.constant 0 : index
      %32 = vector.load %arg7[%c0_17, %c0_18] : memref<8x1xf32, #tpu.memory_space<vmem>>, vector<8x1xf32>
      tpu.vector_store %arg7[%c0_17, %c0_18], %20 {strides = array<i32>} : memref<8x1xf32, #tpu.memory_space<vmem>>, vector<8x1xf32>,
      %c1_i32_19 = arith.constant 1 : i32
      %33 = arith.cmpi eq, %arg2, %c1_i32_19 : i32
      %34 = arith.extui %33 : i1 to i32
      %c0_i32_20 = arith.constant 0 : i32
      %35 = arith.cmpi ne, %34, %c0_i32_20 : i32
      scf.if %35 {
        %c0_21 = arith.constant 0 : index
        %c0_22 = arith.constant 0 : index
        %36 = vector.load %arg7[%c0_21, %c0_22] : memref<8x1xf32, #tpu.memory_space<vmem>>, vector<8x1xf32>
        %c0_23 = arith.constant 0 : index
        %c0_24 = arith.constant 0 : index
        %37 = vector.load %arg8[%c0_23, %c0_24] : memref<8x1xf32, #tpu.memory_space<vmem>>, vector<8x1xf32>
        %38 = math.log %37 : vector<8x1xf32>
        %39 = arith.addf %36, %38 : vector<8x1xf32>
        %c0_25 = arith.constant 0 : index
        %c0_26 = arith.constant 0 : index
        %40 = vector.load %arg7[%c0_25, %c0_26] : memref<8x1xf32, #tpu.memory_space<vmem>>, vector<8x1xf32>
        tpu.vector_store %arg7[%c0_25, %c0_26], %39 {strides = array<i32>} : memref<8x1xf32, #tpu.memory_space<vmem>>, vector<8x1xf32>,
      } else {
      }
    } else {
    }
    %c2_i32 = arith.constant 2 : i32
    %11 = arith.cmpi eq, %arg1, %c2_i32 : i32
    %12 = arith.extui %11 : i1 to i32
    %c0_i32_5 = arith.constant 0 : i32
    %13 = arith.cmpi ne, %12, %c0_i32_5 : i32
    scf.if %13 {
      %c0 = arith.constant 0 : index
      %c0_6 = arith.constant 0 : index
      %14 = vector.load %arg6[%c0, %c0_6] : memref<8x32xf32, #tpu.memory_space<vmem>>, vector<8x32xf32>
      %c0_7 = arith.constant 0 : index
      %c0_8 = arith.constant 0 : index
      %15 = vector.load %arg4[%c0_7, %c0_8] : memref<128x32xf32, #tpu.memory_space<vmem>>, vector<128x32xf32>
      %cst = arith.constant dense<0.000000e+00> : vector<8x128xf32>
      %16 = tpu.matmul %14, %15, %cst {dimension_numbers = #tpu.dot_dimension_numbers<[1], [1], [0], [0], [0, 0, 1, 0], [], []>} : vector<8x32xf32>, vector<128x32xf32>, vector<8x128xf32> -> vector<8x128xf32>
      %c0_9 = arith.constant 0 : index
      %c0_10 = arith.constant 0 : index
      %17 = vector.load %arg7[%c0_9, %c0_10] : memref<8x1xf32, #tpu.memory_space<vmem>>, vector<8x1xf32>
      %18 = vector.broadcast %17 : vector<8x1xf32> to vector<8x128xf32>
      %19 = arith.subf %16, %18 : vector<8x128xf32>
      %c0_11 = arith.constant 0 : index
      %c0_12 = arith.constant 0 : index
      %20 = vector.load %arg5[%c0_11, %c0_12] : memref<8x128xf32, #tpu.memory_space<vmem>>, vector<8x128xf32>
      tpu.vector_store %arg5[%c0_11, %c0_12], %19 {strides = array<i32>} : memref<8x128xf32, #tpu.memory_space<vmem>>, vector<8x128xf32>,
    } else {
    }
    return
  }
  func.func @transform_0(%arg0: i32, %arg1: i32, %arg2: i32) -> (i32, i32) {
    %c0_i32 = arith.constant 0 : i32
    %c0_i32_0 = arith.constant 0 : i32
    return %arg0, %c0_i32 : i32, i32
  }
  func.func @transform_1(%arg0: i32, %arg1: i32, %arg2: i32) -> (i32, i32) {
    %c0_i32 = arith.constant 0 : i32
    %c0_i32_0 = arith.constant 0 : i32
    return %arg2, %c0_i32 : i32, i32
  }
  func.func @transform_2(%arg0: i32, %arg1: i32, %arg2: i32) -> (i32, i32) {
    %c2_i32 = arith.constant 2 : i32
    %0 = arith.cmpi eq, %arg1, %c2_i32 : i32
    %c0_i32 = arith.constant 0 : i32
    %1 = arith.select %0, %arg2, %c0_i32 : i32
    %c0_i32_0 = arith.constant 0 : i32
    return %arg0, %1 : i32, i32
  }
}

</mosaic_0001>

<llo_original>
// kernel: tpu_custom_call.1
$region0: #{tpu_custom_call.1}
  #allocation0 [shape = 'u32[]', space=smem, size = 0x4, offset = 0x4, fixed_abs, tag = 'smem constant byte address 0x4 - core index']
  #allocation1 [shape = 'u32[72,128]{1,0:T(1,128)}', space=vmem, size = 0x9000, scoped, tag = 'internal scratch']
  #allocation2 [shape = 'f32[8,32]{1,0:T(8,128)}', space=vmem, size = 0x1000, scoped, tag = 'scratch operand']
  #allocation3 [shape = 'f32[8,1]{1,0:T(8,128)}', space=vmem, size = 0x1000, scoped, tag = 'scratch operand']
  #allocation4 [shape = 'f32[8,1]{1,0:T(8,128)}', space=vmem, size = 0x1000, scoped, tag = 'scratch operand']
  %s0 = inlined_call_operand.vmem [shape: s32[8,8], index: 0, kind: input, shape index: {}]
  %s1 = inlined_call_operand.vmem [shape: f32[256,32], index: 1, kind: input, shape index: {}]
  %s2 = inlined_call_operand.hbm [shape: f32[8,256], index: 2, kind: output, shape index: {}]
  %s3 = sld [smem:[#allocation0]]
  $region65: #{tpu_custom_call.1} parent=0
    _
  %s5 = ssub.s32 1, %s3
  %s6 = scalar_select 0, %s5, %s3
  $region1: #{tpu_custom_call.1} parent=0
    #allocation5 [shape = 'u8[8192]{0}', space=vmem, size = 0x2000, scoped, tag = 'output window, operand 0']
    #allocation6 [shape = 's32[2]{0}', space=sflag, size = 0x8, scoped, tag = 'scoped memory for tpu_custom_call.1']
    %7 = vsyncpa [#allocation6], 0
    %s8 = scalar_lea.sflag [#allocation6], 1
    %9 = vsyncpa %s8, 0
    loop: start=0, step=1, limit=8
    $region2: #{tpu_custom_call.1} parent=1 // loop_pre_header
      _
    $region3: #{tpu_custom_call.1} parent=1 // loop_header
      %s11 = sphi 0, %s15
      %p12 = scmp.ge.s32.totalorder %s11, 8
      %s18 = sphi 0, %s37
      %s19 = sphi 0, %s33
      %s20 = sphi 0, %s29
      %s21 = sphi 0, %s18
      %s22 = sphi 0, %s19
      %s23 = sphi 0, %s20
      %s24 = sphi 0, %s21
      %s25 = sphi 0, %s22
      %s26 = sphi 0, %s23
      %s40 = sphi 0, %s42
      %s43 = sphi 0, %s40
      %s44 = sphi 0, %s43
      %s60 = sphi 0, %s44
      %s66 = sphi 0, %s68
      %s69 = sphi 0, %s66
      %s70 = sphi 0, %s69
      %s86 = sphi 0, %s70
      %s98 = sphi 0, %s100
      %s101 = sphi 0, %s98
      %s102 = sphi 0, %s101
      %s118 = sphi 0, %s102
    $region4: #{tpu_custom_call.1} parent=1 // loop_header_branch
      %14 = sbr.rel (%p12) target = $region8
    $region5: #{tpu_custom_call.1} parent=1 // loop_body
      %s16 = ssub.s32 %s11, 1
      %s17 = ssub.s32 %s11, 2
      %s27 = sadd.s32 1, %s20
      %p28 = scmp.ge.s32.totalorder %s27, 2
      %s29 = scalar_select %p28, 0, %s27
      %s30 = sadd.s32 1, %s19
      %s31 = scalar_select %p28, %s30, %s19
      %p32 = scmp.ge.s32.totalorder %s31, 3
      %s33 = scalar_select %p32, 0, %s31
      %s34 = sadd.s32 1, %s18
      %s35 = scalar_select %p32, %s34, %s18
      %p36 = scmp.ge.s32.totalorder %s35, 1
      %s37 = scalar_select %p36, 0, %s35
      %s38 = ssub.s32 %s18, %s37
      %p39 = scmp.eq.s32.totalorder %s38, 0
      %s41 = sadd.s32 %s40, 1
      %s42 = scalar_select %p39, %s40, %s41
      %p45 = pneg %p39
      %p46 = scmp.eq.s32.totalorder %s11, 5
      %p47 = por %p45, %p46
      %p48 = scmp.ne.s32.totalorder %s40, %s43
      %p49 = scmp.eq.s32.totalorder %s11, 0
      %p50 = por %p48, %p49
      %p51 = scmp.ne.s32.totalorder %s40, %s43
      %p52 = scmp.eq.s32.totalorder %s16, 5
      %p53 = por %p51, %p52
      %p54 = scmp.ne.s32.totalorder %s43, %s44
      %p55 = scmp.eq.s32.totalorder %s16, 0
      %p56 = por %p54, %p55
      %p57 = scmp.ne.s32.totalorder %s43, %s44
      %p58 = scmp.eq.s32.totalorder %s17, 5
      %p59 = por %p57, %p58
      %p61 = scmp.ne.s32.totalorder %s44, %s60
      %p62 = scmp.eq.s32.totalorder %s17, 0
      %p63 = por %p61, %p62
      %s64 = ssub.s32 %s20, %s29
      %p65 = scmp.eq.s32.totalorder %s64, 0
      %s67 = sadd.s32 %s66, 1
      %s68 = scalar_select %p65, %s66, %s67
      %p71 = pneg %p65
      %p72 = scmp.eq.s32.totalorder %s11, 5
      %p73 = por %p71, %p72
      %p74 = scmp.ne.s32.totalorder %s66, %s69
      %p75 = scmp.eq.s32.totalorder %s11, 0
      %p76 = por %p74, %p75
      %p77 = scmp.ne.s32.totalorder %s66, %s69
      %p78 = scmp.eq.s32.totalorder %s16, 5
      %p79 = por %p77, %p78
      %p80 = scmp.ne.s32.totalorder %s69, %s70
      %p81 = scmp.eq.s32.totalorder %s16, 0
      %p82 = por %p80, %p81
      %p83 = scmp.ne.s32.totalorder %s69, %s70
      %p84 = scmp.eq.s32.totalorder %s17, 5
      %p85 = por %p83, %p84
      %p87 = scmp.ne.s32.totalorder %s70, %s86
      %p88 = scmp.eq.s32.totalorder %s17, 0
      %p89 = por %p87, %p88
      %p90 = scmp.eq.s32.totalorder %s19, 2
      %s91 = scalar_select %p90, %s20, 0
      %p92 = scmp.eq.s32.totalorder %s33, 2
      %s93 = scalar_select %p92, %s29, 0
      %s94 = ssub.s32 %s18, %s37
      %s95 = ssub.s32 %s91, %s93
      %s96 = sor.u32 %s94, %s95
      %p97 = scmp.eq.s32.totalorder %s96, 0
      %s99 = sadd.s32 %s98, 1
      %s100 = scalar_select %p97, %s98, %s99
      %p103 = pneg %p97
      %p104 = scmp.eq.s32.totalorder %s11, 5
      %p105 = por %p103, %p104
      %p106 = scmp.ne.s32.totalorder %s98, %s101
      %p107 = scmp.eq.s32.totalorder %s11, 0
      %p108 = por %p106, %p107
      %p109 = scmp.ne.s32.totalorder %s98, %s101
      %p110 = scmp.eq.s32.totalorder %s16, 5
      %p111 = por %p109, %p110
      %p112 = scmp.ne.s32.totalorder %s101, %s102
      %p113 = scmp.eq.s32.totalorder %s16, 0
      %p114 = por %p112, %p113
      %p115 = scmp.ne.s32.totalorder %s101, %s102
      %p116 = scmp.eq.s32.totalorder %s17, 5
      %p117 = por %p115, %p116
      %p119 = scmp.ne.s32.totalorder %s102, %s118
      %p120 = scmp.eq.s32.totalorder %s17, 0
      %p121 = por %p119, %p120
      %p122 = scmp.le.s32.totalorder 1, %s11
      %p123 = scmp.lt.s32.totalorder %s11, 7
      %p124 = pnand %p122, %p123
      %p125 = pneg %p124
      // Predicated region
      $region9: #{tpu_custom_call.1} parent=5 // pred_check
        _
      $region10: #{tpu_custom_call.1} parent=5 // pred_check_branch
        %127 = sbr.rel (%p124) target = $region12
      $region11: #{tpu_custom_call.1} parent=5 // pred_region
        %s128 = ssub.s32 %s11, 1
        // Predicated region
        $region13: #{tpu_custom_call.1} parent=11 // pred_check
          %p129 = pneg %p56
        $region14: #{tpu_custom_call.1} parent=11 // pred_check_branch
          %131 = sbr.rel (%p129) target = $region16
        $region15: #{tpu_custom_call.1} parent=11 // pred_region
          %p132 = scmp.lt.s32.totalorder %s21, 0
          %s133 = scalar_select %p132, %s21, 0
          %s134 = smul.addr %s133, 8
          %s135 = scalar_lea.vmem %s0, %s134
        $region16: #{tpu_custom_call.1} parent=11 // pred_fallthru
          _
      $region12: #{tpu_custom_call.1} parent=5 // pred_fallthru
        _
      %p136 = scmp.lt.s32.totalorder %s11, 6
      // Predicated region
      $region17: #{tpu_custom_call.1} parent=5 // pred_check
        %p137 = pneg %p136
      $region18: #{tpu_custom_call.1} parent=5 // pred_check_branch
        %139 = sbr.rel (%p137) target = $region20
      $region19: #{tpu_custom_call.1} parent=5 // pred_region
        // Predicated region
        $region21: #{tpu_custom_call.1} parent=19 // pred_check
          %p140 = pneg %p76
        $region22: #{tpu_custom_call.1} parent=19 // pred_check_branch
          %142 = sbr.rel (%p140) target = $region24
        $region23: #{tpu_custom_call.1} parent=19 // pred_region
          %s143 = smul.u32 16, %s20
          %p144 = scmp.lt.s32.totalorder %s143, 31
          %s145 = scalar_select %p144, %s143, 31
          %s146 = smul.addr %s145, 8
          %s147 = scalar_lea.vmem %s1, %s146
          %s148 = smul.u32 16, %s20
        $region24: #{tpu_custom_call.1} parent=19 // pred_fallthru
          _
      $region20: #{tpu_custom_call.1} parent=5 // pred_fallthru
        _
      %p149 = scmp.le.s32.totalorder 1, %s11
      %p150 = scmp.lt.s32.totalorder %s11, 7
      %p151 = pnand %p149, %p150
      %p152 = pneg %p151
      // Predicated region
      $region25: #{tpu_custom_call.1} parent=5 // pred_check
        _
      $region26: #{tpu_custom_call.1} parent=5 // pred_check_branch
        %154 = sbr.rel (%p151) target = $region28
      $region27: #{tpu_custom_call.1} parent=5 // pred_region
        %s155 = ssub.s32 %s11, 1
        %p156 = scmp.lt.s32.totalorder %s21, 0
        %s157 = scalar_select %p156, %s21, 0
        %s158 = smul.addr %s157, 8
        %s159 = scalar_lea.vmem %s0, %s158
        %p160 = pneg %p56
        %p161 = pneg %p53
        %s162 = smul.u32 16, %s23
        %p163 = scmp.lt.s32.totalorder %s162, 31
        %s164 = scalar_select %p163, %s162, 31
        %s165 = smul.addr %s164, 8
        %s166 = scalar_lea.vmem %s1, %s165
        %p167 = pneg %p82
        %p168 = pneg %p79
        %p169 = pneg %p114
        %p170 = pneg %p111
        %s171 = sand.u32 %s101, 1
        %s172 = scalar_lea.sflag [#allocation6], %s171
        %s173 = sand.u32 %s101, 1
        %s174 = smul.addr %s173, 8
        %s175 = scalar_lea.vmem [#allocation5], %s174
        %p176 = scmp.lt.s32.totalorder %s21, 0
        %s177 = scalar_select %p176, %s21, 0
        %s178 = smul.addr %s177, 8
        %s179 = scalar_lea.vmem %s0, %s178
        %s180 = smul.u32 16, %s23
        %p181 = scmp.lt.s32.totalorder %s180, 31
        %s182 = scalar_select %p181, %s180, 31
        %s183 = smul.addr %s182, 8
        %s184 = scalar_lea.vmem %s1, %s183
        %s185 = smul.u32 16, %s23
        %p186 = scmp.eq.s32.totalorder %s22, 2
        %s187 = scalar_select %p186, %s23, 0
        %p188 = scmp.eq.s32.totalorder %s22, 0
        %p189 = scmp.eq.s32.totalorder %s23, 0
        %p190 = pnand %p188, %p189
        %p191 = pneg %p190
        // Predicated region
        $region29: #{tpu_custom_call.1} parent=27 // pred_check
          _
        $region30: #{tpu_custom_call.1} parent=27 // pred_check_branch
          %193 = sbr.rel (%p190) target = $region32
        $region31: #{tpu_custom_call.1} parent=27 // pred_region
          %vm194 = vcmask 261120
          %195 = vst.msk [vmem:[#allocation2] sm:$0xff] %vm194, 0.0
          %vm196 = vcmask 7168
          %197 = vst.msk [vmem:[#allocation3] sm:$0xff] %vm196, -inf
          %198 = vst.msk [vmem:[#allocation4] sm:$0xff] %vm196, 0.0
        $region32: #{tpu_custom_call.1} parent=27 // pred_fallthru
          _
        // Predicated region
        $region33: #{tpu_custom_call.1} parent=27 // pred_check
          %p199 = pneg %p188
        $region34: #{tpu_custom_call.1} parent=27 // pred_check_branch
          %201 = sbr.rel (%p199) target = $region36
        $region35: #{tpu_custom_call.1} parent=27 // pred_region
          %v202 = vlaneseq
          %v203 = vand.u32 %v202, 127
          %s204 = smul.u32 %s23, 128
          %v205 = vstv %s204
          %v206 = vadd.s32 %v203, %v205
          %v207 = vld [vmem:[%s179] sm:$0xff]
          %208 = vset.pattern.permute.xlu0 0
          %209 = vperm.xlu0 %208, %v207
          %v210 = vpop.permute.xlu0 %209
          %vm211 = vcmp.eq.s32.totalorder %v210, %v206
          %v212 = vsel %vm211, 1, 0
          %v213 = vcvt.s32.f32 %v212
          %v214 = vadd.f32 %v213, 0.0
          %215 = vset.pattern.permute.xlu0 1
          %216 = vperm.xlu0 %215, %v207
          %v217 = vpop.permute.xlu0 %216
          %vm218 = vcmp.eq.s32.totalorder %v217, %v206
          %v219 = vsel %vm218, 1, 0
          %v220 = vcvt.s32.f32 %v219
          %v221 = vadd.f32 %v214, %v220
          %222 = vset.pattern.permute.xlu0 2
          %223 = vperm.xlu0 %222, %v207
          %v224 = vpop.permute.xlu0 %223
          %vm225 = vcmp.eq.s32.totalorder %v224, %v206
          %v226 = vsel %vm225, 1, 0
          %v227 = vcvt.s32.f32 %v226
          %v228 = vadd.f32 %v221, %v227
          %229 = vset.pattern.permute.xlu0 3
          %230 = vperm.xlu0 %229, %v207
          %v231 = vpop.permute.xlu0 %230
          %vm232 = vcmp.eq.s32.totalorder %v231, %v206
          %v233 = vsel %vm232, 1, 0
          %v234 = vcvt.s32.f32 %v233
          %v235 = vadd.f32 %v228, %v234
          %236 = vset.pattern.permute.xlu0 4
          %237 = vperm.xlu0 %236, %v207
          %v238 = vpop.permute.xlu0 %237
          %vm239 = vcmp.eq.s32.totalorder %v238, %v206
          %v240 = vsel %vm239, 1, 0
          %v241 = vcvt.s32.f32 %v240
          %v242 = vadd.f32 %v235, %v241
          %243 = vset.pattern.permute.xlu0 5
          %244 = vperm.xlu0 %243, %v207
          %v245 = vpop.permute.xlu0 %244
          %vm246 = vcmp.eq.s32.totalorder %v245, %v206
          %v247 = vsel %vm246, 1, 0
          %v248 = vcvt.s32.f32 %v247
          %v249 = vadd.f32 %v242, %v248
          %250 = vset.pattern.permute.xlu0 6
          %251 = vperm.xlu0 %250, %v207
          %v252 = vpop.permute.xlu0 %251
          %vm253 = vcmp.eq.s32.totalorder %v252, %v206
          %v254 = vsel %vm253, 1, 0
          %v255 = vcvt.s32.f32 %v254
          %v256 = vadd.f32 %v249, %v255
          %257 = vset.pattern.permute.xlu0 7
          %258 = vperm.xlu0 %257, %v207
          %v259 = vpop.permute.xlu0 %258
          %vm260 = vcmp.eq.s32.totalorder %v259, %v206
          %v261 = vsel %vm260, 1, 0
          %v262 = vcvt.s32.f32 %v261
          %v263 = vadd.f32 %v256, %v262
          %v264 = vld [vmem:[#allocation2] sm:$0xff]
          %v265 = vld [vmem:[%s184] sm:$0xff]
          %v266 = vld [vmem:[%s184 + $0x8] sm:$0xff]
          %v267 = vld [vmem:[%s184 + $0x10] sm:$0xff]
          %v268 = vld [vmem:[%s184 + $0x18] sm:$0xff]
          %v269 = vld [vmem:[%s184 + $0x20] sm:$0xff]
          %v270 = vld [vmem:[%s184 + $0x28] sm:$0xff]
          %v271 = vld [vmem:[%s184 + $0x30] sm:$0xff]
          %v272 = vld [vmem:[%s184 + $0x38] sm:$0xff]
          %v273 = vld [vmem:[%s184 + $0x40] sm:$0xff]
          %v274 = vld [vmem:[%s184 + $0x48] sm:$0xff]
          %v275 = vld [vmem:[%s184 + $0x50] sm:$0xff]
          %v276 = vld [vmem:[%s184 + $0x58] sm:$0xff]
          %v277 = vld [vmem:[%s184 + $0x60] sm:$0xff]
          %v278 = vld [vmem:[%s184 + $0x68] sm:$0xff]
          %v279 = vld [vmem:[%s184 + $0x70] sm:$0xff]
          %v280 = vld [vmem:[%s184 + $0x78] sm:$0xff]
          %281 = vmatpush.msra.mxu0 %v280
          %282 = vmatpush.msra.mxu0 %v279
          %283 = vmatpush.msra.mxu0 %v278
          %284 = vmatpush.msra.mxu0 %v277
          %285 = vmatpush.msra.mxu0 %v276
          %286 = vmatpush.msra.mxu0 %v275
          %287 = vmatpush.msra.mxu0 %v274
          %288 = vmatpush.msra.mxu0 %v273
          %289 = vmatpush.msra.mxu0 %v272
          %290 = vmatpush.msra.mxu0 %v271
          %291 = vmatpush.msra.mxu0 %v270
          %292 = vmatpush.msra.mxu0 %v269
          %293 = vmatpush.msra.mxu0 %v268
          %294 = vmatpush.msra.mxu0 %v267
          %295 = vmatpush.msra.mxu0 %v266
          %296 = vmatpush.msra.mxu0 %v265
          %297 = vmatmul.f32.gmra.mxu0 %v263
          %v298 = vpop.f32.mrf.mxu0
          %v299 = vadd.f32 0.0, %v298
          %300 = vdwg.mxu0
          %v301 = vadd.f32 %v264, %v299
          %vm302 = vcmask 261120
          %303 = vst.msk [vmem:[#allocation2] sm:$0xff] %vm302, %v301
          %p304 = scmp.eq.s32.totalorder %s23, 1
          // Predicated region
          $region37: #{tpu_custom_call.1} parent=35 // pred_check
            %p305 = pneg %p304
          $region38: #{tpu_custom_call.1} parent=35 // pred_check_branch
            %307 = sbr.rel (%p305) target = $region40
          $region39: #{tpu_custom_call.1} parent=35 // pred_region
            %v308 = vld [vmem:[#allocation2] sm:$0xff]
            %v309 = vmul.f32 %v308, 0.125
            %310 = vst.msk [vmem:[#allocation2] sm:$0xff] %vm302, %v309
          $region40: #{tpu_custom_call.1} parent=35 // pred_fallthru
            _
        $region36: #{tpu_custom_call.1} parent=27 // pred_fallthru
          _
        %p311 = scmp.eq.s32.totalorder %s22, 1
        // Predicated region
        $region41: #{tpu_custom_call.1} parent=27 // pred_check
          %p312 = pneg %p311
        $region42: #{tpu_custom_call.1} parent=27 // pred_check_branch
          %314 = sbr.rel (%p312) target = $region44
        $region43: #{tpu_custom_call.1} parent=27 // pred_region
          %v315 = vld [vmem:[#allocation2] sm:$0xff]
          %v316 = vld [vmem:[%s184] sm:$0xff]
          %v317 = vld [vmem:[%s184 + $0x8] sm:$0xff]
          %v318 = vld [vmem:[%s184 + $0x10] sm:$0xff]
          %v319 = vld [vmem:[%s184 + $0x18] sm:$0xff]
          %v320 = vld [vmem:[%s184 + $0x20] sm:$0xff]
          %v321 = vld [vmem:[%s184 + $0x28] sm:$0xff]
          %v322 = vld [vmem:[%s184 + $0x30] sm:$0xff]
          %v323 = vld [vmem:[%s184 + $0x38] sm:$0xff]
          %v324 = vld [vmem:[%s184 + $0x40] sm:$0xff]
          %v325 = vld [vmem:[%s184 + $0x48] sm:$0xff]
          %v326 = vld [vmem:[%s184 + $0x50] sm:$0xff]
          %v327 = vld [vmem:[%s184 + $0x58] sm:$0xff]
          %v328 = vld [vmem:[%s184 + $0x60] sm:$0xff]
          %v329 = vld [vmem:[%s184 + $0x68] sm:$0xff]
          %v330 = vld [vmem:[%s184 + $0x70] sm:$0xff]
          %v331 = vld [vmem:[%s184 + $0x78] sm:$0xff]
          %vm332 = vcmask 261120
          %v334 = vsel %vm332, %v315, 0
          %v337 = vsel %vm332, %v316, 0
          %v340 = vsel %vm332, %v317, 0
          %v343 = vsel %vm332, %v318, 0
          %v346 = vsel %vm332, %v319, 0
          %v349 = vsel %vm332, %v320, 0
          %v352 = vsel %vm332, %v321, 0
          %v355 = vsel %vm332, %v322, 0
          %v358 = vsel %vm332, %v323, 0
          %v361 = vsel %vm332, %v324, 0
          %v364 = vsel %vm332, %v325, 0
          %v367 = vsel %vm332, %v326, 0
          %v370 = vsel %vm332, %v327, 0
          %v373 = vsel %vm332, %v328, 0
          %v376 = vsel %vm332, %v329, 0
          %v379 = vsel %vm332, %v330, 0
          %v382 = vsel %vm332, %v331, 0
          %384 = vmatpush.xpose.msra.mxu0 %v382
          %385 = vmatpush.xpose.msra.mxu0 %v379
          %386 = vmatpush.xpose.msra.mxu0 %v376
          %387 = vmatpush.xpose.msra.mxu0 %v373
          %388 = vmatpush.xpose.msra.mxu0 %v370
          %389 = vmatpush.xpose.msra.mxu0 %v367
          %390 = vmatpush.xpose.msra.mxu0 %v364
          %391 = vmatpush.xpose.msra.mxu0 %v361
          %392 = vmatpush.xpose.msra.mxu0 %v358
          %393 = vmatpush.xpose.msra.mxu0 %v355
          %394 = vmatpush.xpose.msra.mxu0 %v352
          %395 = vmatpush.xpose.msra.mxu0 %v349
          %396 = vmatpush.xpose.msra.mxu0 %v346
          %397 = vmatpush.xpose.msra.mxu0 %v343
          %398 = vmatpush.xpose.msra.mxu0 %v340
          %399 = vmatpush.xpose.msra.mxu0 %v337
          %400 = vmatmul.f32.gmra.mxu0 %v334
          %v401 = vpop.f32.mrf.mxu0
          %v402 = vadd.f32 0.0, %v401
          %403 = vdwg.mxu0
          %v404 = vld [vmem:[#allocation3] sm:$0xff]
          %405 = vmax.xlane.f32.xlu0 %v402
          %v406 = vpop.xlane.xlu0 %405
          %v407 = vmax.f32 %v404, %v406
          %v408 = vld [vmem:[#allocation4] sm:$0xff]
          %v409 = vsub.f32 %v404, %v407
          %v410 = vmul.f32 %v409, 1.442695
          %v411 = vpow.pop %v410
          %v412 = vmul.f32 %v408, %v411
          %414 = vset.pattern.permute.xlu0 0
          %415 = vperm.xlu0 %414, %v407
          %v416 = vpop.permute.xlu0 %415
          %v418 = vsub.f32 %v402, %v416
          %v419 = vmul.f32 %v418, 1.442695
          %v420 = vpow.pop %v419
          %421 = vadd.xlane.f32.xlu0 %v420
          %v422 = vpop.xlane.xlu0 %421
          %v423 = vadd.f32 %v412, %v422
          %vm424 = vcmask 7168
          %425 = vst.msk [vmem:[#allocation4] sm:$0xff] %vm424, %v423
          %426 = vst.msk [vmem:[#allocation3] sm:$0xff] %vm424, %v407
          %p427 = scmp.eq.s32.totalorder %s23, 1
          // Predicated region
          $region45: #{tpu_custom_call.1} parent=43 // pred_check
            %p428 = pneg %p427
          $region46: #{tpu_custom_call.1} parent=43 // pred_check_branch
            %430 = sbr.rel (%p428) target = $region48
          $region47: #{tpu_custom_call.1} parent=43 // pred_region
            %v431 = vld [vmem:[#allocation3] sm:$0xff]
            %v432 = vld [vmem:[#allocation4] sm:$0xff]
            %v433 = vlog2.pop %v432
            %v434 = vmul.f32 %v433, 0.6931472
            %v435 = vadd.f32 %v431, %v434
            %436 = vst.msk [vmem:[#allocation3] sm:$0xff] %vm424, %v435
          $region48: #{tpu_custom_call.1} parent=43 // pred_fallthru
            _
        $region44: #{tpu_custom_call.1} parent=27 // pred_fallthru
          _
        %p437 = scmp.eq.s32.totalorder %s22, 2
        // Predicated region
        $region49: #{tpu_custom_call.1} parent=27 // pred_check
          %p438 = pneg %p437
        $region50: #{tpu_custom_call.1} parent=27 // pred_check_branch
          %440 = sbr.rel (%p438) target = $region52
        $region51: #{tpu_custom_call.1} parent=27 // pred_region
          %v441 = vld [vmem:[#allocation2] sm:$0xff]
          %v442 = vld [vmem:[%s184] sm:$0xff]
          %v443 = vld [vmem:[%s184 + $0x8] sm:$0xff]
          %v444 = vld [vmem:[%s184 + $0x10] sm:$0xff]
          %v445 = vld [vmem:[%s184 + $0x18] sm:$0xff]
          %v446 = vld [vmem:[%s184 + $0x20] sm:$0xff]
          %v447 = vld [vmem:[%s184 + $0x28] sm:$0xff]
          %v448 = vld [vmem:[%s184 + $0x30] sm:$0xff]
          %v449 = vld [vmem:[%s184 + $0x38] sm:$0xff]
          %v450 = vld [vmem:[%s184 + $0x40] sm:$0xff]
          %v451 = vld [vmem:[%s184 + $0x48] sm:$0xff]
          %v452 = vld [vmem:[%s184 + $0x50] sm:$0xff]
          %v453 = vld [vmem:[%s184 + $0x58] sm:$0xff]
          %v454 = vld [vmem:[%s184 + $0x60] sm:$0xff]
          %v455 = vld [vmem:[%s184 + $0x68] sm:$0xff]
          %v456 = vld [vmem:[%s184 + $0x70] sm:$0xff]
          %v457 = vld [vmem:[%s184 + $0x78] sm:$0xff]
          %vm458 = vcmask 261120
          %v460 = vsel %vm458, %v441, 0
          %v463 = vsel %vm458, %v442, 0
          %v466 = vsel %vm458, %v443, 0
          %v469 = vsel %vm458, %v444, 0
          %v472 = vsel %vm458, %v445, 0
          %v475 = vsel %vm458, %v446, 0
          %v478 = vsel %vm458, %v447, 0
          %v481 = vsel %vm458, %v448, 0
          %v484 = vsel %vm458, %v449, 0
          %v487 = vsel %vm458, %v450, 0
          %v490 = vsel %vm458, %v451, 0
          %v493 = vsel %vm458, %v452, 0
          %v496 = vsel %vm458, %v453, 0
          %v499 = vsel %vm458, %v454, 0
          %v502 = vsel %vm458, %v455, 0
          %v505 = vsel %vm458, %v456, 0
          %v508 = vsel %vm458, %v457, 0
          %510 = vmatpush.xpose.msra.mxu0 %v508
          %511 = vmatpush.xpose.msra.mxu0 %v505
          %512 = vmatpush.xpose.msra.mxu0 %v502
          %513 = vmatpush.xpose.msra.mxu0 %v499
          %514 = vmatpush.xpose.msra.mxu0 %v496
          %515 = vmatpush.xpose.msra.mxu0 %v493
          %516 = vmatpush.xpose.msra.mxu0 %v490
          %517 = vmatpush.xpose.msra.mxu0 %v487
          %518 = vmatpush.xpose.msra.mxu0 %v484
          %519 = vmatpush.xpose.msra.mxu0 %v481
          %520 = vmatpush.xpose.msra.mxu0 %v478
          %521 = vmatpush.xpose.msra.mxu0 %v475
          %522 = vmatpush.xpose.msra.mxu0 %v472
          %523 = vmatpush.xpose.msra.mxu0 %v469
          %524 = vmatpush.xpose.msra.mxu0 %v466
          %525 = vmatpush.xpose.msra.mxu0 %v463
          %526 = vmatmul.f32.gmra.mxu0 %v460
          %v527 = vpop.f32.mrf.mxu0
          %v528 = vadd.f32 0.0, %v527
          %529 = vdwg.mxu0
          %v530 = vld [vmem:[#allocation3] sm:$0xff]
          %532 = vset.pattern.permute.xlu0 0
          %533 = vperm.xlu0 %532, %v530
          %v534 = vpop.permute.xlu0 %533
          %v536 = vsub.f32 %v528, %v534
          %537 = vst [vmem:[%s175] sm:$0xff] %v536
        $region52: #{tpu_custom_call.1} parent=27 // pred_fallthru
          _
        %s538 = sand.u32 %s101, 1
        %s539 = scalar_lea.sflag [#allocation6], %s538
        %s540 = sand.u32 %s101, 1
        %s541 = smul.addr %s540, 8
        %s542 = scalar_lea.vmem [#allocation5], %s541
        // Predicated region
        $region53: #{tpu_custom_call.1} parent=27 // pred_check
          %p543 = pneg %p111
        $region54: #{tpu_custom_call.1} parent=27 // pred_check_branch
          %545 = sbr.rel (%p543) target = $region56
        $region55: #{tpu_custom_call.1} parent=27 // pred_region
          %p546 = scmp.eq.s32.totalorder %s22, 2
          %s547 = scalar_select %p546, %s23, 0
          %549 = vsyncadd %s539, 0
          %s550 = smul.addr %s21, 2
          %s551 = sadd.s32 %s547, %s550
          %s552 = smul.addr %s551, 8
          %s553 = scalar_lea.hbm %s2, %s552
          %s555 = sshll.u32 %s542, 4
          %s556 = int_to_ptr.vmem [resolvable:$true] %s555
          %s557 = sshll.u32 %s553, 4
          %s558 = int_to_ptr.hbm [resolvable:$true] %s557
          %560 = dma.vmem_to_hbm [thread:$0]  %s556, 128, %s558, %s539
        $region56: #{tpu_custom_call.1} parent=27 // pred_fallthru
          _
      $region28: #{tpu_custom_call.1} parent=5 // pred_fallthru
        _
      %p561 = scmp.le.s32.totalorder 2, %s11
      // Predicated region
      $region57: #{tpu_custom_call.1} parent=5 // pred_check
        %p562 = pneg %p561
      $region58: #{tpu_custom_call.1} parent=5 // pred_check_branch
        %564 = sbr.rel (%p562) target = $region60
      $region59: #{tpu_custom_call.1} parent=5 // pred_region
        %s565 = ssub.s32 %s11, 2
        // Predicated region
        $region61: #{tpu_custom_call.1} parent=59 // pred_check
          %p566 = pneg %p117
        $region62: #{tpu_custom_call.1} parent=59 // pred_check_branch
          %568 = sbr.rel (%p566) target = $region64
        $region63: #{tpu_custom_call.1} parent=59 // pred_region
          %s569 = sand.u32 %s102, 1
          %s570 = scalar_lea.sflag [#allocation6], %s569
          %s571 = sand.u32 %s102, 1
          %s572 = smul.addr %s571, 8
          %s573 = scalar_lea.vmem [#allocation5], %s572
          %575 = dma.done %s570, 128
        $region64: #{tpu_custom_call.1} parent=59 // pred_fallthru
          _
      $region60: #{tpu_custom_call.1} parent=5 // pred_fallthru
        _
    $region6: #{tpu_custom_call.1} parent=1 // loop_footer
      %s15 = sadd.s32 1, %s11
    $region7: #{tpu_custom_call.1} parent=1 // loop_footer_branch
      %10 = sbr.rel target = $region3
    $region8: #{tpu_custom_call.1} parent=1 // loop_exit
      _
    %576 = vsyncpa [#allocation6], 1
    %s577 = scalar_lea.sflag [#allocation6], 1
    %578 = vsyncpa %s577, 1

</llo_original>
